<compile_context>
chip_gen: v6e
topology: v6e:2x2x1
jax: 0.10.0
libtpu: 0.0.40
codegen_flags: <defaults>
</compile_context>

<pallas_src>
import jax
import jax.numpy as jnp
from jax.experimental import pallas as pl
from jax.experimental.pallas import tpu as pltpu


def _log_softmax2_kernel(x_ref, o_ref):
    """Pairwise (2-class) log-softmax over the two channel halves of a tile.

    x_ref : (1, a2, bn) input tile  (rows [0,c) = class 0, rows [c,a2) = class 1)
    o_ref : (1, a2, bn) output tile (same channel layout, log-probs)
    """
    a2 = x_ref.shape[1]
    c = a2 // 2
    x = x_ref[0].astype(jnp.float32)           # (a2, bn)
    x0 = x[:c, :]                              # class-0 logits
    x1 = x[c:, :]                              # class-1 logits

    # log-softmax over the pair with one exp + one log:
    #   lse = max(x0, x1) + s,  s = log(1 + exp(-|x1 - x0|))
    #   lp(max class) = -s ; lp(min class) = -|d| - s
    d = x1 - x0
    ad = jnp.abs(d)
    s = jnp.log(1.0 + jnp.exp(-ad))
    lp_max = -s
    lp_min = -ad - s
    x0_is_max = d <= 0.0
    o_ref[0, :c, :] = jnp.where(x0_is_max, lp_max, lp_min).astype(o_ref.dtype)
    o_ref[0, c:, :] = jnp.where(x0_is_max, lp_min, lp_max).astype(o_ref.dtype)


def _pick_bn(hw, a2, itemsize):
    """Largest lane block that (a) divides hw, (b) is a multiple of 128 (or all
    of hw), and (c) keeps the double-buffered in+out tiles under ~8 MiB."""
    budget = 8 * 1024 * 1024
    per_lane_bytes = 4 * a2 * max(itemsize, 2)      # (in + out) x 2 buffers
    cap = max(128, (budget // per_lane_bytes) // 128 * 128)
    if hw % 128 != 0 or hw <= cap:
        return hw                                   # full-extent lane block
    n128 = hw // 128
    best = 128
    for f in range(1, n128 + 1):
        if n128 % f == 0 and f * 128 <= cap:
            best = f * 128
    return best


def softmax_loss(cls):
    """cls: (b, a2, h, w) NCHW float array -> (b, a2//2, h, w, 2) log-probs."""
    b, a2, h, w = cls.shape
    assert a2 % 2 == 0 and a2 >= 2
    c = a2 // 2
    hw = h * w
    itemsize = jnp.dtype(cls.dtype).itemsize

    # Free reshape; the channel split happens inside the kernel (zero copy).
    x = cls.reshape(b, a2, hw)

    bn = _pick_bn(hw, a2, itemsize)
    grid = (b, pl.cdiv(hw, bn))

    n_pairs = b * c * hw
    cost = pl.CostEstimate(
        flops=10 * n_pairs,
        transcendentals=2 * n_pairs,                 # one exp + one log per pair
        bytes_accessed=4 * n_pairs * itemsize,       # read 2E + write 2E elements
    )

    out = pl.pallas_call(
        _log_softmax2_kernel,
        out_shape=jax.ShapeDtypeStruct((b, a2, hw), cls.dtype),
        grid_spec=pltpu.PrefetchScalarGridSpec(
            num_scalar_prefetch=0,
            grid=grid,
            in_specs=[pl.BlockSpec((1, a2, bn), lambda bi, j: (bi, 0, j))],
            out_specs=pl.BlockSpec((1, a2, bn), lambda bi, j: (bi, 0, j)),
        ),
        compiler_params=pltpu.CompilerParams(
            dimension_semantics=("parallel", "parallel"),
            vmem_limit_bytes=32 * 1024 * 1024,
        ),
        cost_estimate=cost,
    )(x)

    # Final assembly, mirroring the PyTorch view + permute:
    # (b, a2, h*w) -> (b, 2, c, h, w) -> (b, c, h, w, 2), one fused XLA pass.
    out = out.reshape(b, 2, c, h, w)
    return jnp.transpose(out, (0, 2, 3, 4, 1))


def _reference(cls):
    b, a2, h, w = cls.shape
    c = a2 // 2
    x = cls.reshape(b, 2, c, h, w)
    x = jnp.transpose(x, (0, 2, 3, 4, 1))
    return jax.nn.log_softmax(x, axis=4)


if __name__ == "__main__":
    key = jax.random.PRNGKey(0)
    # b=2, a2=8 (= 2 * num_anchors), h=w=16
    cls = jax.random.normal(key, (2, 8, 16, 16), dtype=jnp.float32)

    out = jax.jit(softmax_loss)(cls)
    out = jax.block_until_ready(out)

    ref = _reference(cls)
    assert out.shape == (2, 4, 16, 16, 2), out.shape
    assert jnp.allclose(out, ref, atol=1e-5, rtol=1e-5), "mismatch vs reference"

    print("KERNEL_OK")
</pallas_src>

<mosaic_0001>
module attributes {stable_mosaic.version = 11 : i64} {
  func.func @_log_softmax2_kernel(%arg0: i32, %arg1: i32, %arg2: memref<1x8x256xf32, #tpu.memory_space<vmem>>, %arg3: memref<1x8x256xf32, #tpu.memory_space<vmem>>) attributes {dimension_semantics = [#tpu.dimension_semantics<parallel>, #tpu.dimension_semantics<parallel>], iteration_bounds = array<i64: 2, 1>, scalar_prefetch = 0 : i64, scratch_operands = 0 : i64, tpu.core_type = #tpu.core_type<tc>, window_params = [{transform_indices = @transform_0, window_bounds = array<i64: 1, 8, 256>}, {transform_indices = @transform_1, window_bounds = array<i64: 1, 8, 256>}]} {
    %c0 = arith.constant 0 : index
    %c0_0 = arith.constant 0 : index
    %c0_1 = arith.constant 0 : index
    %0 = vector.load %arg2[%c0, %c0_0, %c0_1] : memref<1x8x256xf32, #tpu.memory_space<vmem>>, vector<1x8x256xf32>
    %1 = vector.shape_cast %0 : vector<1x8x256xf32> to vector<8x256xf32>
    %2 = vector.extract_strided_slice %1 {offsets = [0, 0], sizes = [4, 256], strides = [1, 1]} : vector<8x256xf32> to vector<4x256xf32>
    %3 = vector.extract_strided_slice %1 {offsets = [4, 0], sizes = [4, 256], strides = [1, 1]} : vector<8x256xf32> to vector<4x256xf32>
    %4 = arith.subf %3, %2 : vector<4x256xf32>
    %5 = math.absf %4 : vector<4x256xf32>
    %cst = arith.constant 0.000000e+00 : f32
    %6 = vector.broadcast %cst : f32 to vector<4x256xf32>
    %7 = arith.subf %6, %5 : vector<4x256xf32>
    %8 = math.exp %7 : vector<4x256xf32>
    %cst_2 = arith.constant 1.000000e+00 : f32
    %9 = vector.broadcast %cst_2 : f32 to vector<4x256xf32>
    %10 = arith.addf %9, %8 : vector<4x256xf32>
    %11 = math.log %10 : vector<4x256xf32>
    %cst_3 = arith.constant 0.000000e+00 : f32
    %12 = vector.broadcast %cst_3 : f32 to vector<4x256xf32>
    %13 = arith.subf %12, %11 : vector<4x256xf32>
    %cst_4 = arith.constant 0.000000e+00 : f32
    %14 = vector.broadcast %cst_4 : f32 to vector<4x256xf32>
    %15 = arith.subf %14, %5 : vector<4x256xf32>
    %16 = arith.subf %15, %11 : vector<4x256xf32>
    %cst_5 = arith.constant 0.000000e+00 : f32
    %17 = vector.broadcast %cst_5 : f32 to vector<4x256xf32>
    %18 = arith.cmpf ole, %4, %17 : vector<4x256xf32>
    %19 = arith.select %18, %13, %16 : vector<4x256xi1>, vector<4x256xf32>
    %c0_6 = arith.constant 0 : index
    %c0_7 = arith.constant 0 : index
    %c0_8 = arith.constant 0 : index
    %20 = vector.load %arg3[%c0_6, %c0_7, %c0_8] : memref<1x8x256xf32, #tpu.memory_space<vmem>>, vector<1x4x256xf32>
    %21 = vector.shape_cast %20 : vector<1x4x256xf32> to vector<4x256xf32>
    %22 = vector.shape_cast %19 : vector<4x256xf32> to vector<1x4x256xf32>
    tpu.vector_store %arg3[%c0_6, %c0_7, %c0_8], %22 {strides = array<i32>} : memref<1x8x256xf32, #tpu.memory_space<vmem>>, vector<1x4x256xf32>,
    %23 = arith.select %18, %16, %13 : vector<4x256xi1>, vector<4x256xf32>
    %c0_9 = arith.constant 0 : index
    %c4 = arith.constant 4 : index
    %c0_10 = arith.constant 0 : index
    %24 = vector.load %arg3[%c0_9, %c4, %c0_10] : memref<1x8x256xf32, #tpu.memory_space<vmem>>, vector<1x4x256xf32>
    %25 = vector.shape_cast %24 : vector<1x4x256xf32> to vector<4x256xf32>
    %26 = vector.shape_cast %23 : vector<4x256xf32> to vector<1x4x256xf32>
    tpu.vector_store %arg3[%c0_9, %c4, %c0_10], %26 {strides = array<i32>} : memref<1x8x256xf32, #tpu.memory_space<vmem>>, vector<1x4x256xf32>,
    return
  }
  func.func @transform_0(%arg0: i32, %arg1: i32) -> (i32, i32, i32) {
    %c0_i32 = arith.constant 0 : i32
    %c0_i32_0 = arith.constant 0 : i32
    return %arg0, %c0_i32, %arg1 : i32, i32, i32
  }
  func.func @transform_1(%arg0: i32, %arg1: i32) -> (i32, i32, i32) {
    %c0_i32 = arith.constant 0 : i32
    %c0_i32_0 = arith.constant 0 : i32
    return %arg0, %c0_i32, %arg1 : i32, i32, i32
  }
}

</mosaic_0001>

<llo_original>
// kernel: softmax_loss.1
$region0: #{softmax_loss.1}
  #allocation0 [shape = 'u32[]', space=smem, size = 0x4, offset = 0x4, fixed_abs, tag = 'smem constant byte address 0x4 - core index']
  #allocation1 [shape = 'u32[144,128]{1,0:T(1,128)}', space=vmem, size = 0x12000, scoped, tag = 'internal scratch']
  %s0 = inlined_call_operand.vmem [shape: f32[2,8,256], index: 0, kind: input, shape index: {}]
  %s1 = inlined_call_operand.vmem [shape: f32[2,8,256], index: 1, kind: output, shape index: {}]
  %s2 = sld [smem:[#allocation0]]
  $region37: #{softmax_loss.1} parent=0
    _
  %s4 = ssub.s32 1, %s2
  %s5 = scalar_select 0, %s4, %s2
  loop: start=0, step=1, limit=4
  $region2: #{softmax_loss.1} parent=0 // loop_pre_header
    _
  $region3: #{softmax_loss.1} parent=0 // loop_header
    %s7 = sphi 0, %s11
    %p8 = scmp.ge.s32.totalorder %s7, 4
    %s14 = sphi 0, %s26
    %s15 = sphi 0, %s22
    %s16 = sphi 0, %s14
    %s17 = sphi 0, %s15
    %s18 = sphi 0, %s16
    %s19 = sphi 0, %s17
    %s31 = sphi 0, %s33
    %s34 = sphi 0, %s31
    %s35 = sphi 0, %s34
    %s51 = sphi 0, %s35
    %s59 = sphi 0, %s61
    %s62 = sphi 0, %s59
    %s63 = sphi 0, %s62
    %s79 = sphi 0, %s63
  $region4: #{softmax_loss.1} parent=0 // loop_header_branch
    %10 = sbr.rel (%p8) target = $region8
  $region5: #{softmax_loss.1} parent=0 // loop_body
    %s12 = ssub.s32 %s7, 1
    %s13 = ssub.s32 %s7, 2
    %s20 = sadd.s32 1, %s15
    %p21 = scmp.ge.s32.totalorder %s20, 1
    %s22 = scalar_select %p21, 0, %s20
    %s23 = sadd.s32 1, %s14
    %s24 = scalar_select %p21, %s23, %s14
    %p25 = scmp.ge.s32.totalorder %s24, 2
    %s26 = scalar_select %p25, 0, %s24
    %s27 = ssub.s32 %s14, %s26
    %s28 = ssub.s32 %s15, %s22
    %s29 = sor.u32 %s27, %s28
    %p30 = scmp.eq.s32.totalorder %s29, 0
    %s32 = sadd.s32 %s31, 1
    %s33 = scalar_select %p30, %s31, %s32
    %p36 = pneg %p30
    %p37 = scmp.eq.s32.totalorder %s7, 1
    %p38 = por %p36, %p37
    %p39 = scmp.ne.s32.totalorder %s31, %s34
    %p40 = scmp.eq.s32.totalorder %s7, 0
    %p41 = por %p39, %p40
    %p42 = scmp.ne.s32.totalorder %s31, %s34
    %p43 = scmp.eq.s32.totalorder %s12, 1
    %p44 = por %p42, %p43
    %p45 = scmp.ne.s32.totalorder %s34, %s35
    %p46 = scmp.eq.s32.totalorder %s12, 0
    %p47 = por %p45, %p46
    %p48 = scmp.ne.s32.totalorder %s34, %s35
    %p49 = scmp.eq.s32.totalorder %s13, 1
    %p50 = por %p48, %p49
    %p52 = scmp.ne.s32.totalorder %s35, %s51
    %p53 = scmp.eq.s32.totalorder %s13, 0
    %p54 = por %p52, %p53
    %s55 = ssub.s32 %s14, %s26
    %s56 = ssub.s32 %s15, %s22
    %s57 = sor.u32 %s55, %s56
    %p58 = scmp.eq.s32.totalorder %s57, 0
    %s60 = sadd.s32 %s59, 1
    %s61 = scalar_select %p58, %s59, %s60
    %p64 = pneg %p58
    %p65 = scmp.eq.s32.totalorder %s7, 1
    %p66 = por %p64, %p65
    %p67 = scmp.ne.s32.totalorder %s59, %s62
    %p68 = scmp.eq.s32.totalorder %s7, 0
    %p69 = por %p67, %p68
    %p70 = scmp.ne.s32.totalorder %s59, %s62
    %p71 = scmp.eq.s32.totalorder %s12, 1
    %p72 = por %p70, %p71
    %p73 = scmp.ne.s32.totalorder %s62, %s63
    %p74 = scmp.eq.s32.totalorder %s12, 0
    %p75 = por %p73, %p74
    %p76 = scmp.ne.s32.totalorder %s62, %s63
    %p77 = scmp.eq.s32.totalorder %s13, 1
    %p78 = por %p76, %p77
    %p80 = scmp.ne.s32.totalorder %s63, %s79
    %p81 = scmp.eq.s32.totalorder %s13, 0
    %p82 = por %p80, %p81
    %p83 = scmp.le.s32.totalorder 1, %s7
    %p84 = scmp.lt.s32.totalorder %s7, 3
    %p85 = pnand %p83, %p84
    %p86 = pneg %p85
    // Predicated region
    $region9: #{softmax_loss.1} parent=5 // pred_check
      _
    $region10: #{softmax_loss.1} parent=5 // pred_check_branch
      %88 = sbr.rel (%p85) target = $region12
    $region11: #{softmax_loss.1} parent=5 // pred_region
      %s89 = ssub.s32 %s7, 1
    $region12: #{softmax_loss.1} parent=5 // pred_fallthru
      _
    %p90 = scmp.lt.s32.totalorder %s7, 2
    // Predicated region
    $region13: #{softmax_loss.1} parent=5 // pred_check
      %p91 = pneg %p90
    $region14: #{softmax_loss.1} parent=5 // pred_check_branch
      %93 = sbr.rel (%p91) target = $region16
    $region15: #{softmax_loss.1} parent=5 // pred_region
      // Predicated region
      $region17: #{softmax_loss.1} parent=15 // pred_check
        %p94 = pneg %p41
      $region18: #{softmax_loss.1} parent=15 // pred_check_branch
        %96 = sbr.rel (%p94) target = $region20
      $region19: #{softmax_loss.1} parent=15 // pred_region
        %s97 = smul.u32 2, %s15
        %p98 = scmp.lt.s32.totalorder %s14, 1
        %s99 = scalar_select %p98, %s14, 1
        %p100 = scmp.lt.s32.totalorder %s97, 1
        %s101 = scalar_select %p100, %s97, 1
        %s102 = smul.addr %s99, 2
        %s103 = sadd.s32 %s101, %s102
        %s104 = smul.addr %s103, 8
        %s105 = scalar_lea.vmem %s0, %s104
        %s106 = smul.u32 2, %s15
      $region20: #{softmax_loss.1} parent=15 // pred_fallthru
        _
    $region16: #{softmax_loss.1} parent=5 // pred_fallthru
      _
    %p107 = scmp.le.s32.totalorder 1, %s7
    %p108 = scmp.lt.s32.totalorder %s7, 3
    %p109 = pnand %p107, %p108
    %p110 = pneg %p109
    // Predicated region
    $region21: #{softmax_loss.1} parent=5 // pred_check
      _
    $region22: #{softmax_loss.1} parent=5 // pred_check_branch
      %112 = sbr.rel (%p109) target = $region24
    $region23: #{softmax_loss.1} parent=5 // pred_region
      %s113 = ssub.s32 %s7, 1
      %s114 = smul.u32 2, %s17
      %p115 = scmp.lt.s32.totalorder %s16, 1
      %s116 = scalar_select %p115, %s16, 1
      %p117 = scmp.lt.s32.totalorder %s114, 1
      %s118 = scalar_select %p117, %s114, 1
      %s119 = smul.addr %s116, 2
      %s120 = sadd.s32 %s118, %s119
      %s121 = smul.addr %s120, 8
      %s122 = scalar_lea.vmem %s0, %s121
      %p123 = pneg %p47
      %p124 = pneg %p44
      %p125 = pneg %p75
      %p126 = pneg %p72
      %s127 = smul.u32 2, %s17
      %p128 = scmp.lt.s32.totalorder %s16, 1
      %s129 = scalar_select %p128, %s16, 1
      %p130 = scmp.lt.s32.totalorder %s127, 1
      %s131 = scalar_select %p130, %s127, 1
      %s132 = smul.addr %s129, 2
      %s133 = sadd.s32 %s131, %s132
      %s134 = smul.addr %s133, 8
      %s135 = scalar_lea.vmem %s1, %s134
      %s136 = smul.u32 2, %s17
      %p137 = scmp.lt.s32.totalorder %s16, 1
      %s138 = scalar_select %p137, %s16, 1
      %p139 = scmp.lt.s32.totalorder %s136, 1
      %s140 = scalar_select %p139, %s136, 1
      %s141 = smul.addr %s138, 2
      %s142 = sadd.s32 %s140, %s141
      %s143 = smul.addr %s142, 8
      %s144 = scalar_lea.vmem %s0, %s143
      %s145 = smul.u32 2, %s17
      %s146 = smul.u32 2, %s17
      %p147 = scmp.lt.s32.totalorder %s16, 1
      %s148 = scalar_select %p147, %s16, 1
      %p149 = scmp.lt.s32.totalorder %s146, 1
      %s150 = scalar_select %p149, %s146, 1
      %s151 = smul.addr %s148, 2
      %s152 = sadd.s32 %s150, %s151
      %s153 = smul.addr %s152, 8
      %s154 = scalar_lea.vmem %s1, %s153
      %s155 = smul.u32 2, %s17
      %v156 = vld [vmem:[%s144] sm:$0xff]
      %v157 = vld [vmem:[%s144 + $0x8] sm:$0xff]
      %v160 = vrot.slane %v156, 4
      %v161 = vrot.slane %v157, 4
      %v164 = vsub.f32 %v156, %v160
      %v165 = vsub.f32 %v157, %v161
      %v166 = vand.u32 2147483647, %v164
      %v167 = vand.u32 2147483647, %v165
      %v168 = vsub.f32 0.0, %v166
      %v169 = vsub.f32 0.0, %v167
      %v170 = vmul.f32 %v168, 1.442695
      %v171 = vpow.pop %v170
      %v172 = vmul.f32 %v169, 1.442695
      %v173 = vpow.pop %v172
      %v174 = vadd.f32 %v171, 1.0
      %v175 = vadd.f32 %v173, 1.0
      %v176 = vlog2.pop %v174
      %v177 = vmul.f32 %v176, 0.6931472
      %v178 = vlog2.pop %v175
      %v179 = vmul.f32 %v178, 0.6931472
      %v180 = vsub.f32 0.0, %v177
      %v181 = vsub.f32 0.0, %v179
      %v182 = vsub.f32 %v168, %v177
      %v183 = vsub.f32 %v169, %v179
      %vm184 = vcmp.le.f32.partialorder %v164, 0.0
      %vm185 = vcmp.le.f32.partialorder %v165, 0.0
      %v186 = vsel %vm184, %v180, %v182
      %v187 = vsel %vm185, %v181, %v183
      %v190 = vrot.slane %v186, 4
      %v191 = vrot.slane %v187, 4
      %194 = vst [vmem:[%s154] sm:$0xf] %v190
      %195 = vst [vmem:[%s154 + $0x8] sm:$0xf] %v191
      %v196 = vsel %vm184, %v182, %v180
      %v197 = vsel %vm185, %v183, %v181
      %198 = vst [vmem:[%s154] sm:$0xf0] %v196
      %199 = vst [vmem:[%s154 + $0x8] sm:$0xf0] %v197
      %s200 = smul.u32 2, %s17
      %p201 = scmp.lt.s32.totalorder %s16, 1
      %s202 = scalar_select %p201, %s16, 1
      %p203 = scmp.lt.s32.totalorder %s200, 1
      %s204 = scalar_select %p203, %s200, 1
      %s205 = smul.addr %s202, 2
      %s206 = sadd.s32 %s204, %s205
      %s207 = smul.addr %s206, 8
      %s208 = scalar_lea.vmem %s1, %s207
      // Predicated region
      $region25: #{softmax_loss.1} parent=23 // pred_check
        %p209 = pneg %p72
      $region26: #{softmax_loss.1} parent=23 // pred_check_branch
        %211 = sbr.rel (%p209) target = $region28
      $region27: #{softmax_loss.1} parent=23 // pred_region
        %s212 = smul.u32 2, %s17
      $region28: #{softmax_loss.1} parent=23 // pred_fallthru
        _
    $region24: #{softmax_loss.1} parent=5 // pred_fallthru
      _
    %p213 = scmp.le.s32.totalorder 2, %s7
    // Predicated region
    $region29: #{softmax_loss.1} parent=5 // pred_check
      %p214 = pneg %p213
    $region30: #{softmax_loss.1} parent=5 // pred_check_branch
      %216 = sbr.rel (%p214) target = $region32
    $region31: #{softmax_loss.1} parent=5 // pred_region
      %s217 = ssub.s32 %s7, 2
      // Predicated region
      $region33: #{softmax_loss.1} parent=31 // pred_check
        %p218 = pneg %p78
      $region34: #{softmax_loss.1} parent=31 // pred_check_branch
        %220 = sbr.rel (%p218) target = $region36
      $region35: #{softmax_loss.1} parent=31 // pred_region
        %s221 = smul.u32 2, %s19
        %p222 = scmp.lt.s32.totalorder %s18, 1
        %s223 = scalar_select %p222, %s18, 1
        %p224 = scmp.lt.s32.totalorder %s221, 1
        %s225 = scalar_select %p224, %s221, 1
        %s226 = smul.addr %s223, 2
        %s227 = sadd.s32 %s225, %s226
        %s228 = smul.addr %s227, 8
        %s229 = scalar_lea.vmem %s1, %s228
      $region36: #{softmax_loss.1} parent=31 // pred_fallthru
        _
    $region32: #{softmax_loss.1} parent=5 // pred_fallthru
      _
  $region6: #{softmax_loss.1} parent=0 // loop_footer
    %s11 = sadd.s32 1, %s7
  $region7: #{softmax_loss.1} parent=0 // loop_footer_branch
    %6 = sbr.rel target = $region3
  $region8: #{softmax_loss.1} parent=0 // loop_exit
    _

</llo_original>
